<compile_context>
chip_gen: v7x
topology: tpu7x:2x2x1
jax: 0.10.0
libtpu: 0.0.40
codegen_flags: <defaults>
</compile_context>

<pallas_src>
import math
import numbers

import jax
import jax.numpy as jnp
from jax.experimental import pallas as pl
from jax.experimental.pallas import tpu as pltpu


# ----------------------------------------------------------------------------
# Weight construction (mirrors GaussianSmoothing.__init__)
# ----------------------------------------------------------------------------
def _normalize_params(kernel_size, sigma, dim):
    if isinstance(kernel_size, numbers.Number):
        kernel_size = [int(kernel_size)] * dim
    if isinstance(sigma, numbers.Number):
        sigma = [float(sigma)] * dim
    return list(kernel_size), list(sigma)


def gaussian_weight(channels, kernel_size, sigma, dim=2):
    """Full (channels, K0, K1) weight exactly as the PyTorch module builds it."""
    kernel_size, sigma = _normalize_params(kernel_size, sigma, dim)
    grids = jnp.meshgrid(
        *[jnp.arange(s, dtype=jnp.float32) for s in kernel_size], indexing="ij"
    )
    kernel = jnp.ones((), jnp.float32)
    for size, std, mgrid in zip(kernel_size, sigma, grids):
        mean = (size - 1) / 2.0
        kernel = kernel * (
            1.0 / (std * math.sqrt(2.0 * math.pi))
            * jnp.exp(-(((mgrid - mean) / std) ** 2) / 2.0)
        )
    kernel = kernel / jnp.sum(kernel)
    return jnp.broadcast_to(kernel, (channels,) + kernel.shape)


def gaussian_1d(size, sigma):
    """Normalized 1-D Gaussian; outer(g_h, g_w) equals the module's 2-D kernel."""
    coords = jnp.arange(size, dtype=jnp.float32)
    mean = (size - 1) / 2.0
    g = jnp.exp(-(((coords - mean) / sigma) ** 2) / 2.0)
    return g / jnp.sum(g)


def _toeplitz(w1d, in_size):
    """Banded Toeplitz A with A[o, o+k] = w1d[k]; A @ x is the valid 1-D corr."""
    K = w1d.shape[0]
    out_size = in_size - K + 1
    rows = jnp.arange(out_size)[:, None]
    cols = jnp.arange(in_size)[None, :]
    k = cols - rows
    mask = (k >= 0) & (k < K)
    return jnp.where(mask, w1d[jnp.clip(k, 0, K - 1)], 0.0).astype(jnp.float32)


# ----------------------------------------------------------------------------
# Pallas kernel: two single 2-D MXU matmuls per batch element.
# ----------------------------------------------------------------------------
def _smoothing_kernel(x_ref, ah_ref, bdw_ref, o_ref):
    # x_ref  : (1, H, C*W)   one batch element, channels folded into lanes (bf16)
    # ah_ref : (Ho, H)       height-pass Toeplitz (bf16)
    # bdw_ref: (C*W, C*Wo)   width-pass per-channel block-diagonal Toeplitz (bf16)
    # o_ref  : (1, Ho, C*Wo) f32 output slab
    x2 = x_ref[0]                                                    # (H, C*W)

    # Height pass: single non-batched MXU matmul, lane dim = C*W.
    t1 = jnp.dot(ah_ref[...], x2, preferred_element_type=jnp.float32)  # (Ho, C*W)

    # Width pass: single MXU matmul against the block-diagonal Toeplitz
    # (no per-channel batched matmuls, no in-kernel transposes); lane dim = C*Wo.
    out = jnp.dot(t1.astype(jnp.bfloat16), bdw_ref[...],
                  preferred_element_type=jnp.float32)                # (Ho, C*Wo)

    o_ref[0] = out.astype(o_ref.dtype)


def gaussian_smoothing_2d(x, w_h, w_w):
    """x: (N, C, H, W) f32; w_h: (Kh,), w_w: (Kw,) normalized 1-D Gaussians.

    Returns (N, C, H-Kh+1, W-Kw+1) f32 — same as F.conv2d(x, weight, groups=C)."""
    N, C, H, W = x.shape
    Kh, Kw = int(w_h.shape[0]), int(w_w.shape[0])
    Ho, Wo = H - Kh + 1, W - Kw + 1
    CW, CWo = C * W, C * Wo

    # Small MXU operands, built once at trace time, stored bf16 (native MXU dtype).
    a_h = _toeplitz(w_h, H).astype(jnp.bfloat16)                          # (Ho, H)
    a_wT = _toeplitz(w_w, W).T                                            # (W, Wo)
    bdw = jnp.kron(jnp.eye(C, dtype=jnp.float32), a_wT).astype(jnp.bfloat16)  # (C*W, C*Wo)

    # Wrapper-side layout plumbing (not compute): fold channels into the lane
    # dimension so both passes are single 2-D matmuls with no in-kernel
    # transposes, and cast the HBM input to bf16 (halves read traffic).
    x_l = jnp.transpose(x, (0, 2, 1, 3)).reshape(N, H, CW).astype(jnp.bfloat16)

    # TODO(synk): for real image sizes, replace the full (W,Wo)/(C*W,C*Wo)
    # Toeplitz operands with a shared banded per-tile operand (T_out, T_out+K-1)
    # padded to the MXU native size (128 on v5e, 256 on v6e/v7x), tile W into
    # 128/256-wide lane-dense output strips with a Kw-1 input halo, tile H into
    # row strips budgeted against scoped VMEM (16 MiB default on v5e, 64 MiB
    # physical on v7x via vmem_limit_bytes), and use edge-truncated bands on
    # boundary strips.

    flops = 2 * N * Ho * H * CW + 2 * N * Ho * CW * CWo
    bytes_accessed = (N * H * CW * 2) + (Ho * H * 2) + (CW * CWo * 2) + (N * Ho * CWo * 4)

    out = pl.pallas_call(
        _smoothing_kernel,
        out_shape=jax.ShapeDtypeStruct((N, Ho, CWo), jnp.float32),
        grid=(N,),
        in_specs=[
            pl.BlockSpec((1, H, CW), lambda n: (n, 0, 0)),
            pl.BlockSpec((Ho, H), lambda n: (0, 0)),
            pl.BlockSpec((CW, CWo), lambda n: (0, 0)),
        ],
        out_specs=pl.BlockSpec((1, Ho, CWo), lambda n: (n, 0, 0)),
        compiler_params=pltpu.CompilerParams(
            dimension_semantics=("parallel",),
        ),
        cost_estimate=pl.CostEstimate(
            flops=flops, transcendentals=0, bytes_accessed=bytes_accessed
        ),
    )(x_l, a_h, bdw)

    # Unfold channels back out of the lane dimension (wrapper-side layout).
    return out.reshape(N, Ho, C, Wo).transpose(0, 2, 1, 3)


# ----------------------------------------------------------------------------
# Pure-JAX reference (PyTorch conv2d is correlation; depthwise "valid")
# ----------------------------------------------------------------------------
def _reference(x, weight):
    C = x.shape[1]
    w = weight[:, None, :, :]  # (C, 1, Kh, Kw) like the torch buffer
    return jax.lax.conv_general_dilated(
        x, w, window_strides=(1, 1), padding="VALID",
        dimension_numbers=("NCHW", "OIHW", "NCHW"),
        feature_group_count=C,
    )


if __name__ == "__main__":
    # Module config: GaussianSmoothing(channels=4, kernel_size=5, sigma=1.0, dim=2)
    channels, kernel_size, sigma, dim = 4, 5, 1.0, 2
    N, C, H, W = 2, channels, 16, 16

    key = jax.random.PRNGKey(0)
    x = jax.random.normal(key, (N, C, H, W), dtype=jnp.float32)

    ks, sg = _normalize_params(kernel_size, sigma, dim)
    w_h = gaussian_1d(ks[0], sg[0])   # (Kh,)
    w_w = gaussian_1d(ks[1], sg[1])   # (Kw,)

    out = gaussian_smoothing_2d(x, w_h, w_w)
    out = jax.block_until_ready(out)

    weight = gaussian_weight(channels, kernel_size, sigma, dim=dim)  # (C, Kh, Kw)
    ref = _reference(x, weight)

    assert out.shape == (N, C, H - ks[0] + 1, W - ks[1] + 1)
    # bf16 MXU operands with f32 accumulation: tolerance loosened vs. the f32 reference.
    assert jnp.allclose(out, ref, atol=3e-2, rtol=3e-2), "mismatch vs reference"

    print("KERNEL_OK")
</pallas_src>

<mosaic_0001>
module attributes {stable_mosaic.version = 11 : i64} {
  func.func @_smoothing_kernel(%arg0: i32, %arg1: memref<1x16x64xbf16, #tpu.memory_space<vmem>>, %arg2: memref<12x16xbf16, #tpu.memory_space<vmem>>, %arg3: memref<64x48xbf16, #tpu.memory_space<vmem>>, %arg4: memref<1x12x48xf32, #tpu.memory_space<vmem>>) attributes {dimension_semantics = [#tpu.dimension_semantics<parallel>], iteration_bounds = array<i64: 2>, scalar_prefetch = 0 : i64, scratch_operands = 0 : i64, tpu.core_type = #tpu.core_type<tc>, window_params = [{transform_indices = @transform_0, window_bounds = array<i64: 1, 16, 64>}, {pipeline_mode = #tpu.pipeline_mode<synchronous>, transform_indices = @transform_1, window_bounds = array<i64: 12, 16>}, {pipeline_mode = #tpu.pipeline_mode<synchronous>, transform_indices = @transform_2, window_bounds = array<i64: 64, 48>}, {transform_indices = @transform_3, window_bounds = array<i64: 1, 12, 48>}]} {
    %c0 = arith.constant 0 : index
    %c0_0 = arith.constant 0 : index
    %c0_1 = arith.constant 0 : index
    %0 = vector.load %arg1[%c0, %c0_0, %c0_1] : memref<1x16x64xbf16, #tpu.memory_space<vmem>>, vector<1x16x64xbf16>
    %1 = vector.shape_cast %0 : vector<1x16x64xbf16> to vector<16x64xbf16>
    %c0_2 = arith.constant 0 : index
    %c0_3 = arith.constant 0 : index
    %2 = vector.load %arg2[%c0_2, %c0_3] : memref<12x16xbf16, #tpu.memory_space<vmem>>, vector<12x16xbf16>
    %cst = arith.constant dense<0.000000e+00> : vector<12x64xf32>
    %3 = tpu.matmul %2, %1, %cst {dimension_numbers = #tpu.dot_dimension_numbers<[1], [0], [0], [1], [0, 0, 1, 1], [], []>} : vector<12x16xbf16>, vector<16x64xbf16>, vector<12x64xf32> -> vector<12x64xf32>
    %4 = arith.truncf %3 : vector<12x64xf32> to vector<12x64xbf16>
    %c0_4 = arith.constant 0 : index
    %c0_5 = arith.constant 0 : index
    %5 = vector.load %arg3[%c0_4, %c0_5] : memref<64x48xbf16, #tpu.memory_space<vmem>>, vector<64x48xbf16>
    %cst_6 = arith.constant dense<0.000000e+00> : vector<12x48xf32>
    %6 = tpu.matmul %4, %5, %cst_6 {dimension_numbers = #tpu.dot_dimension_numbers<[1], [0], [0], [1], [0, 0, 1, 1], [], []>} : vector<12x64xbf16>, vector<64x48xbf16>, vector<12x48xf32> -> vector<12x48xf32>
    %c0_7 = arith.constant 0 : index
    %c0_8 = arith.constant 0 : index
    %c0_9 = arith.constant 0 : index
    %7 = vector.load %arg4[%c0_7, %c0_8, %c0_9] : memref<1x12x48xf32, #tpu.memory_space<vmem>>, vector<1x12x48xf32>
    %8 = vector.shape_cast %7 : vector<1x12x48xf32> to vector<12x48xf32>
    %9 = vector.shape_cast %6 : vector<12x48xf32> to vector<1x12x48xf32>
    tpu.vector_store %arg4[%c0_7, %c0_8, %c0_9], %9 {strides = array<i32>} : memref<1x12x48xf32, #tpu.memory_space<vmem>>, vector<1x12x48xf32>,
    return
  }
  func.func @transform_0(%arg0: i32) -> (i32, i32, i32) {
    %c0_i32 = arith.constant 0 : i32
    %c0_i32_0 = arith.constant 0 : i32
    %c0_i32_1 = arith.constant 0 : i32
    return %arg0, %c0_i32, %c0_i32_0 : i32, i32, i32
  }
  func.func @transform_1(%arg0: i32) -> (i32, i32) {
    %c0_i32 = arith.constant 0 : i32
    %c0_i32_0 = arith.constant 0 : i32
    %c0_i32_1 = arith.constant 0 : i32
    return %c0_i32, %c0_i32_0 : i32, i32
  }
  func.func @transform_2(%arg0: i32) -> (i32, i32) {
    %c0_i32 = arith.constant 0 : i32
    %c0_i32_0 = arith.constant 0 : i32
    %c0_i32_1 = arith.constant 0 : i32
    return %c0_i32, %c0_i32_0 : i32, i32
  }
  func.func @transform_3(%arg0: i32) -> (i32, i32, i32) {
    %c0_i32 = arith.constant 0 : i32
    %c0_i32_0 = arith.constant 0 : i32
    %c0_i32_1 = arith.constant 0 : i32
    return %arg0, %c0_i32, %c0_i32_0 : i32, i32, i32
  }
}

</mosaic_0001>

<llo_original>
// kernel: tpu_custom_call.1
$region0: #{tpu_custom_call.1}
  #allocation0 [shape = 'u32[]', space=smem, size = 0x4, offset = 0x4, fixed_abs, tag = 'smem constant byte address 0x4 - core index']
  #allocation1 [shape = 'u32[144,128]{1,0:T(1,128)}', space=vmem, size = 0x12000, scoped, tag = 'internal scratch']
  %s0 = inlined_call_operand.vmem [shape: bf16[2,16,64], index: 0, kind: input, shape index: {}]
  %s1 = inlined_call_operand.vmem [shape: bf16[12,16], index: 1, kind: input, shape index: {}]
  %s2 = inlined_call_operand.vmem [shape: bf16[64,48], index: 2, kind: input, shape index: {}]
  %s3 = inlined_call_operand.vmem [shape: f32[2,12,48], index: 3, kind: output, shape index: {}]
  %s4 = sld [smem:[#allocation0]]
  $region45: #{tpu_custom_call.1} parent=0
    _
  %s6 = ssub.s32 1, %s4
  %s7 = scalar_select 0, %s6, %s4
  loop: start=0, step=1, limit=4
  $region2: #{tpu_custom_call.1} parent=0 // loop_pre_header
    _
  $region3: #{tpu_custom_call.1} parent=0 // loop_header
    %s9 = sphi 0, %s13
    %p10 = scmp.ge.s32.totalorder %s9, 4
    %s19 = sphi 0, %s21
    %s22 = sphi 0, %s19
    %s23 = sphi 0, %s22
    %s39 = sphi 0, %s23
    %s43 = sphi 0, %s43
    %s45 = sphi 0, %s43
    %s46 = sphi 0, %s45
    %s60 = sphi 0, %s46
    %s64 = sphi 0, %s64
    %s66 = sphi 0, %s64
    %s67 = sphi 0, %s66
    %s81 = sphi 0, %s67
    %s87 = sphi 0, %s89
    %s90 = sphi 0, %s87
    %s91 = sphi 0, %s90
    %s107 = sphi 0, %s91
  $region4: #{tpu_custom_call.1} parent=0 // loop_header_branch
    %12 = sbr.rel (%p10) target = $region8
  $region5: #{tpu_custom_call.1} parent=0 // loop_body
    %s14 = ssub.s32 %s9, 1
    %s15 = ssub.s32 %s9, 2
    %s16 = sadd.s32 %s9, 1
    %s17 = ssub.s32 %s9, %s16
    %p18 = scmp.eq.s32.totalorder %s17, 0
    %s20 = sadd.s32 %s19, 1
    %s21 = scalar_select %p18, %s19, %s20
    %p24 = pneg %p18
    %p25 = scmp.eq.s32.totalorder %s9, 1
    %p26 = por %p24, %p25
    %p27 = scmp.ne.s32.totalorder %s19, %s22
    %p28 = scmp.eq.s32.totalorder %s9, 0
    %p29 = por %p27, %p28
    %p30 = scmp.ne.s32.totalorder %s19, %s22
    %p31 = scmp.eq.s32.totalorder %s14, 1
    %p32 = por %p30, %p31
    %p33 = scmp.ne.s32.totalorder %s22, %s23
    %p34 = scmp.eq.s32.totalorder %s14, 0
    %p35 = por %p33, %p34
    %p36 = scmp.ne.s32.totalorder %s22, %s23
    %p37 = scmp.eq.s32.totalorder %s15, 1
    %p38 = por %p36, %p37
    %p40 = scmp.ne.s32.totalorder %s23, %s39
    %p41 = scmp.eq.s32.totalorder %s15, 0
    %p42 = por %p40, %p41
    %s44 = sadd.s32 %s43, 1
    %p47 = scmp.eq.s32.totalorder %s9, 1
    %p48 = scmp.ne.s32.totalorder %s43, %s45
    %p49 = scmp.eq.s32.totalorder %s9, 0
    %p50 = por %p48, %p49
    %p51 = scmp.ne.s32.totalorder %s43, %s45
    %p52 = scmp.eq.s32.totalorder %s14, 1
    %p53 = por %p51, %p52
    %p54 = scmp.ne.s32.totalorder %s45, %s46
    %p55 = scmp.eq.s32.totalorder %s14, 0
    %p56 = por %p54, %p55
    %p57 = scmp.ne.s32.totalorder %s45, %s46
    %p58 = scmp.eq.s32.totalorder %s15, 1
    %p59 = por %p57, %p58
    %p61 = scmp.ne.s32.totalorder %s46, %s60
    %p62 = scmp.eq.s32.totalorder %s15, 0
    %p63 = por %p61, %p62
    %s65 = sadd.s32 %s64, 1
    %p68 = scmp.eq.s32.totalorder %s9, 1
    %p69 = scmp.ne.s32.totalorder %s64, %s66
    %p70 = scmp.eq.s32.totalorder %s9, 0
    %p71 = por %p69, %p70
    %p72 = scmp.ne.s32.totalorder %s64, %s66
    %p73 = scmp.eq.s32.totalorder %s14, 1
    %p74 = por %p72, %p73
    %p75 = scmp.ne.s32.totalorder %s66, %s67
    %p76 = scmp.eq.s32.totalorder %s14, 0
    %p77 = por %p75, %p76
    %p78 = scmp.ne.s32.totalorder %s66, %s67
    %p79 = scmp.eq.s32.totalorder %s15, 1
    %p80 = por %p78, %p79
    %p82 = scmp.ne.s32.totalorder %s67, %s81
    %p83 = scmp.eq.s32.totalorder %s15, 0
    %p84 = por %p82, %p83
    %s85 = ssub.s32 %s9, %s16
    %p86 = scmp.eq.s32.totalorder %s85, 0
    %s88 = sadd.s32 %s87, 1
    %s89 = scalar_select %p86, %s87, %s88
    %p92 = pneg %p86
    %p93 = scmp.eq.s32.totalorder %s9, 1
    %p94 = por %p92, %p93
    %p95 = scmp.ne.s32.totalorder %s87, %s90
    %p96 = scmp.eq.s32.totalorder %s9, 0
    %p97 = por %p95, %p96
    %p98 = scmp.ne.s32.totalorder %s87, %s90
    %p99 = scmp.eq.s32.totalorder %s14, 1
    %p100 = por %p98, %p99
    %p101 = scmp.ne.s32.totalorder %s90, %s91
    %p102 = scmp.eq.s32.totalorder %s14, 0
    %p103 = por %p101, %p102
    %p104 = scmp.ne.s32.totalorder %s90, %s91
    %p105 = scmp.eq.s32.totalorder %s15, 1
    %p106 = por %p104, %p105
    %p108 = scmp.ne.s32.totalorder %s91, %s107
    %p109 = scmp.eq.s32.totalorder %s15, 0
    %p110 = por %p108, %p109
    %p111 = scmp.le.s32.totalorder 1, %s9
    %p112 = scmp.lt.s32.totalorder %s9, 3
    %p113 = pnand %p111, %p112
    %p114 = pneg %p113
    // Predicated region
    $region9: #{tpu_custom_call.1} parent=5 // pred_check
      _
    $region10: #{tpu_custom_call.1} parent=5 // pred_check_branch
      %116 = sbr.rel (%p113) target = $region12
    $region11: #{tpu_custom_call.1} parent=5 // pred_region
      %s117 = ssub.s32 %s9, 1
      // Predicated region
      $region13: #{tpu_custom_call.1} parent=11 // pred_check
        %p118 = pneg %p56
      $region14: #{tpu_custom_call.1} parent=11 // pred_check_branch
        %120 = sbr.rel (%p118) target = $region16
      $region15: #{tpu_custom_call.1} parent=11 // pred_region
        _
      $region16: #{tpu_custom_call.1} parent=11 // pred_fallthru
        _
      // Predicated region
      $region17: #{tpu_custom_call.1} parent=11 // pred_check
        %p121 = pneg %p77
      $region18: #{tpu_custom_call.1} parent=11 // pred_check_branch
        %123 = sbr.rel (%p121) target = $region20
      $region19: #{tpu_custom_call.1} parent=11 // pred_region
        _
      $region20: #{tpu_custom_call.1} parent=11 // pred_fallthru
        _
    $region12: #{tpu_custom_call.1} parent=5 // pred_fallthru
      _
    %p124 = scmp.lt.s32.totalorder %s9, 2
    // Predicated region
    $region21: #{tpu_custom_call.1} parent=5 // pred_check
      %p125 = pneg %p124
    $region22: #{tpu_custom_call.1} parent=5 // pred_check_branch
      %127 = sbr.rel (%p125) target = $region24
    $region23: #{tpu_custom_call.1} parent=5 // pred_region
      // Predicated region
      $region25: #{tpu_custom_call.1} parent=23 // pred_check
        %p128 = pneg %p29
      $region26: #{tpu_custom_call.1} parent=23 // pred_check_branch
        %130 = sbr.rel (%p128) target = $region28
      $region27: #{tpu_custom_call.1} parent=23 // pred_region
        %p131 = scmp.lt.s32.totalorder %s9, 1
        %s132 = scalar_select %p131, %s9, 1
        %s133 = smul.addr %s132, 2
        %s134 = smul.addr %s133, 4
        %s135 = scalar_lea.vmem %s0, %s134
      $region28: #{tpu_custom_call.1} parent=23 // pred_fallthru
        _
    $region24: #{tpu_custom_call.1} parent=5 // pred_fallthru
      _
    %p136 = scmp.le.s32.totalorder 1, %s9
    %p137 = scmp.lt.s32.totalorder %s9, 3
    %p138 = pnand %p136, %p137
    %p139 = pneg %p138
    // Predicated region
    $region29: #{tpu_custom_call.1} parent=5 // pred_check
      _
    $region30: #{tpu_custom_call.1} parent=5 // pred_check_branch
      %141 = sbr.rel (%p138) target = $region32
    $region31: #{tpu_custom_call.1} parent=5 // pred_region
      %s142 = ssub.s32 %s9, 1
      %p143 = scmp.lt.s32.totalorder %s14, 1
      %s144 = scalar_select %p143, %s14, 1
      %s145 = smul.addr %s144, 2
      %s146 = smul.addr %s145, 4
      %s147 = scalar_lea.vmem %s0, %s146
      %p148 = pneg %p35
      %p149 = pneg %p32
      %p150 = pneg %p56
      %p151 = pneg %p53
      %p152 = pneg %p77
      %p153 = pneg %p74
      %p154 = pneg %p103
      %p155 = pneg %p100
      %p156 = scmp.lt.s32.totalorder %s14, 1
      %s157 = scalar_select %p156, %s14, 1
      %s158 = smul.addr %s157, 2
      %s159 = smul.addr %s158, 8
      %s160 = scalar_lea.vmem %s3, %s159
      %p161 = scmp.lt.s32.totalorder %s14, 1
      %s162 = scalar_select %p161, %s14, 1
      %s163 = smul.addr %s162, 2
      %s164 = smul.addr %s163, 4
      %s165 = scalar_lea.vmem %s0, %s164
      %p166 = scmp.lt.s32.totalorder %s14, 1
      %s167 = scalar_select %p166, %s14, 1
      %s168 = smul.addr %s167, 2
      %s169 = smul.addr %s168, 8
      %s170 = scalar_lea.vmem %s3, %s169
      %v172 = vld [vmem:[%s165] sm:$0xf]
      %v173 = vld [vmem:[%s165 + $0x4] sm:$0xf]
      %v174 = vld [vmem:[%s1] sm:$0xf]
      %v175 = vld [vmem:[%s1 + $0x4] sm:$0x3]
      %v178 = vunpack.c.l.b16 %v174
      %v179 = vunpack.c.l.b16 %v175
      %v180 = vpack.c.b16 %v179, %v178
      %v183 = vunpack.c.l.b16 %v172
      %v184 = vunpack.c.l.b16 %v173
      %v185 = vpack.c.b16 %v184, %v183
      %vm187 = vcmask 130048
      %v189 = vsel %vm187, %v180, 0
      %191 = vmatprep.subr.bf16.mxu0 0
      %192 = vmatpush1.bf16.msra.mxu0 %v185
      %193 = vmatprep.subr.bf16.mxu0 0
      %194 = vmatpush1.bf16.msra.mxu0 0
      %195 = vmatprep.subr.bf16.mxu0 0
      %196 = vmatpush1.bf16.msra.mxu0 0
      %197 = vmatprep.subr.bf16.mxu0 0
      %198 = vmatpush1.bf16.msra.mxu0 0
      %199 = vmatprep.subr.bf16.mxu0 0
      %200 = vmatpush1.bf16.msra.mxu0 0
      %201 = vmatprep.subr.bf16.mxu0 0
      %202 = vmatpush1.bf16.msra.mxu0 0
      %203 = vmatprep.subr.bf16.mxu0 0
      %204 = vmatpush1.bf16.msra.mxu0 0
      %205 = vmatprep.subr.bf16.mxu0 0
      %206 = vmatpush1.bf16.msra.mxu0 0
      %207 = vmatprep.subr.bf16.mxu0 0
      %208 = vmatpush1.bf16.msra.mxu0 0
      %209 = vmatprep.subr.bf16.mxu0 0
      %210 = vmatpush1.bf16.msra.mxu0 0
      %211 = vmatprep.subr.bf16.mxu0 0
      %212 = vmatpush1.bf16.msra.mxu0 0
      %213 = vmatprep.subr.bf16.mxu0 0
      %214 = vmatpush1.bf16.msra.mxu0 0
      %215 = vmatprep.subr.bf16.mxu0 0
      %216 = vmatpush1.bf16.msra.mxu0 0
      %217 = vmatprep.subr.bf16.mxu0 0
      %218 = vmatpush1.bf16.msra.mxu0 0
      %219 = vmatprep.subr.bf16.mxu0 0
      %220 = vmatpush1.bf16.msra.mxu0 0
      %221 = vmatprep.subr.bf16.mxu0 0
      %222 = vmatpush1.bf16.msra.mxu0 0
      %223 = vmatprep.mubr.bf16.mxu0 0
      %224 = vmatmul.mubr.bf16.gmra.mrb[0].mxu0 %v189
      %v225 = vpop.f32.mrb[0].mxu0
      %v226 = vadd.f32 0.0, %v225
      %v227 = vpop.f32.mrb[0].mxu0
      %v228 = vpop.f32.mrb[0].mxu0
      %v229 = vadd.f32 0.0, %v228
      %v230 = vpop.f32.mrb[0].mxu0
      %231 = vdwg.mxu0
      %v232 = vpack.c.bf16 %v229, %v226
      %v233 = vld [vmem:[%s2] sm:$0xf]
      %v234 = vld [vmem:[%s2 + $0x4] sm:$0xf]
      %v235 = vld [vmem:[%s2 + $0x8] sm:$0xf]
      %v236 = vld [vmem:[%s2 + $0xc] sm:$0xf]
      %v237 = vld [vmem:[%s2 + $0x10] sm:$0xf]
      %v238 = vld [vmem:[%s2 + $0x14] sm:$0xf]
      %v239 = vld [vmem:[%s2 + $0x18] sm:$0xf]
      %v240 = vld [vmem:[%s2 + $0x1c] sm:$0xf]
      %v249 = vunpack.c.l.b16 %v233
      %v250 = vunpack.c.l.b16 %v234
      %v251 = vunpack.c.l.b16 %v235
      %v252 = vunpack.c.l.b16 %v236
      %v253 = vunpack.c.l.b16 %v237
      %v254 = vunpack.c.l.b16 %v238
      %v255 = vunpack.c.l.b16 %v239
      %v256 = vunpack.c.l.b16 %v240
      %v257 = vpack.c.b16 %v250, %v249
      %v258 = vpack.c.b16 %v252, %v251
      %v259 = vpack.c.b16 %v254, %v253
      %v260 = vpack.c.b16 %v256, %v255
      %vm265 = vcmask 523264
      %v267 = vsel %vm265, %v232, 0
      %269 = vmatprep.subr.bf16.mxu0 0
      %270 = vmatpush1.bf16.msra.mxu0 %v257
      %271 = vmatprep.subr.bf16.mxu0 0
      %272 = vmatpush1.bf16.msra.mxu0 %v258
      %273 = vmatprep.subr.bf16.mxu0 0
      %274 = vmatpush1.bf16.msra.mxu0 %v259
      %275 = vmatprep.subr.bf16.mxu0 0
      %276 = vmatpush1.bf16.msra.mxu0 %v260
      %277 = vmatprep.subr.bf16.mxu0 0
      %278 = vmatpush1.bf16.msra.mxu0 0
      %279 = vmatprep.subr.bf16.mxu0 0
      %280 = vmatpush1.bf16.msra.mxu0 0
      %281 = vmatprep.subr.bf16.mxu0 0
      %282 = vmatpush1.bf16.msra.mxu0 0
      %283 = vmatprep.subr.bf16.mxu0 0
      %284 = vmatpush1.bf16.msra.mxu0 0
      %285 = vmatprep.subr.bf16.mxu0 0
      %286 = vmatpush1.bf16.msra.mxu0 0
      %287 = vmatprep.subr.bf16.mxu0 0
      %288 = vmatpush1.bf16.msra.mxu0 0
      %289 = vmatprep.subr.bf16.mxu0 0
      %290 = vmatpush1.bf16.msra.mxu0 0
      %291 = vmatprep.subr.bf16.mxu0 0
      %292 = vmatpush1.bf16.msra.mxu0 0
      %293 = vmatprep.subr.bf16.mxu0 0
      %294 = vmatpush1.bf16.msra.mxu0 0
      %295 = vmatprep.subr.bf16.mxu0 0
      %296 = vmatpush1.bf16.msra.mxu0 0
      %297 = vmatprep.subr.bf16.mxu0 0
      %298 = vmatpush1.bf16.msra.mxu0 0
      %299 = vmatprep.subr.bf16.mxu0 0
      %300 = vmatpush1.bf16.msra.mxu0 0
      %301 = vmatprep.mubr.bf16.mxu0 0
      %302 = vmatmul.mubr.bf16.gmra.mrb[0].mxu0 %v267
      %v303 = vpop.f32.mrb[0].mxu0
      %v304 = vadd.f32 0.0, %v303
      %v305 = vpop.f32.mrb[0].mxu0
      %v306 = vpop.f32.mrb[0].mxu0
      %v307 = vadd.f32 0.0, %v306
      %v308 = vpop.f32.mrb[0].mxu0
      %309 = vdwg.mxu0
      %vm310 = vcmask 392192
      %311 = vst.msk [vmem:[%s170] sm:$0xff] %vm310, %v304
      %vm312 = vcmask 388096
      %313 = vst.msk [vmem:[%s170 + $0x8] sm:$0xf] %vm312, %v307
      %p314 = scmp.lt.s32.totalorder %s14, 1
      %s315 = scalar_select %p314, %s14, 1
      %s316 = smul.addr %s315, 2
      %s317 = smul.addr %s316, 8
      %s318 = scalar_lea.vmem %s3, %s317
      // Predicated region
      $region33: #{tpu_custom_call.1} parent=31 // pred_check
        %p319 = pneg %p100
      $region34: #{tpu_custom_call.1} parent=31 // pred_check_branch
        %321 = sbr.rel (%p319) target = $region36
      $region35: #{tpu_custom_call.1} parent=31 // pred_region
        _
      $region36: #{tpu_custom_call.1} parent=31 // pred_fallthru
        _
    $region32: #{tpu_custom_call.1} parent=5 // pred_fallthru
      _
    %p322 = scmp.le.s32.totalorder 2, %s9
    // Predicated region
    $region37: #{tpu_custom_call.1} parent=5 // pred_check
      %p323 = pneg %p322
    $region38: #{tpu_custom_call.1} parent=5 // pred_check_branch
      %325 = sbr.rel (%p323) target = $region40
    $region39: #{tpu_custom_call.1} parent=5 // pred_region
      %s326 = ssub.s32 %s9, 2
      // Predicated region
      $region41: #{tpu_custom_call.1} parent=39 // pred_check
        %p327 = pneg %p106
      $region42: #{tpu_custom_call.1} parent=39 // pred_check_branch
        %329 = sbr.rel (%p327) target = $region44
      $region43: #{tpu_custom_call.1} parent=39 // pred_region
        %p330 = scmp.lt.s32.totalorder %s15, 1
        %s331 = scalar_select %p330, %s15, 1
        %s332 = smul.addr %s331, 2
        %s333 = smul.addr %s332, 8
        %s334 = scalar_lea.vmem %s3, %s333
      $region44: #{tpu_custom_call.1} parent=39 // pred_fallthru
        _
    $region40: #{tpu_custom_call.1} parent=5 // pred_fallthru
      _
  $region6: #{tpu_custom_call.1} parent=0 // loop_footer
    %s13 = sadd.s32 1, %s9
  $region7: #{tpu_custom_call.1} parent=0 // loop_footer_branch
    %8 = sbr.rel target = $region3
  $region8: #{tpu_custom_call.1} parent=0 // loop_exit
    _

</llo_original>
